<compile_context>
chip_gen: v5e
topology: v5e:2x2
jax: 0.10.0
libtpu: 0.0.40
codegen_flags: <defaults>
</compile_context>

<pallas_src>
import functools

import jax
import jax.numpy as jnp
from jax import lax
from jax.experimental import pallas as pl
from jax.experimental.pallas import tpu as pltpu


# ----------------------------------------------------------------------------- kernel

def _cib_partials_kernel(y_pred_ref, y_true_ref, mu_ref, logvar_ref, s_ref, z_ref,
                         w_ref, b_ref,
                         scal_ref, mom_ref,
                         ce_acc, kl_acc, pos_acc, sz_acc, sz2_acc, siv_acc, sivm_acc, sivm2_acc,
                         *, b_real, tiles_per_core, dz):
    """Accumulates per-core partial sums; the cheap finalize math happens in the wrapper."""
    core = pl.program_id(0)
    i = pl.program_id(1)
    last_i = pl.num_programs(1) - 1
    tb = y_pred_ref.shape[0]

    # ---------------- init accumulators (first batch tile of this core) ----------------
    @pl.when(i == 0)
    def _init():
        ce_acc[...] = jnp.zeros_like(ce_acc)
        kl_acc[...] = jnp.zeros_like(kl_acc)
        pos_acc[...] = jnp.zeros_like(pos_acc)
        sz_acc[...] = jnp.zeros_like(sz_acc)
        sz2_acc[...] = jnp.zeros_like(sz2_acc)
        siv_acc[...] = jnp.zeros_like(siv_acc)
        sivm_acc[...] = jnp.zeros_like(sivm_acc)
        sivm2_acc[...] = jnp.zeros_like(sivm2_acc)

    # Row-validity mask.  Uses the *unclamped* global tile index, so both partial last tiles
    # and fully-out-of-range (clamped-duplicate) tiles contribute exactly zero.
    tile = core * tiles_per_core + i
    row_ids = tile * tb + lax.broadcasted_iota(jnp.int32, (tb, 1), 0)
    valid = row_ids < b_real                                           # [tb, 1] bool

    # ---------------- cross entropy (per-row, summed across rows here) ----------------
    logits = jnp.where(valid, y_pred_ref[...].astype(jnp.float32), 0.0)
    col = lax.broadcasted_iota(jnp.int32, logits.shape, 1)
    row_max = jnp.max(logits, axis=-1, keepdims=True)
    shifted = logits - row_max
    lse = jnp.log(jnp.sum(jnp.exp(shifted), axis=-1, keepdims=True))   # [tb, 1]
    label_logit = jnp.sum(jnp.where(col == y_true_ref[...], shifted, 0.0),
                          axis=-1, keepdims=True)                      # [tb, 1]
    ce_rows = jnp.where(valid, lse - label_logit, 0.0)
    ce_acc[...] += jnp.sum(ce_rows, axis=0, keepdims=True)             # sublane reduce only

    # ---------------- KL term (per-column partials; lanes reduced at finalize) ----------------
    mu = jnp.where(valid, mu_ref[...].astype(jnp.float32), 0.0)
    lv = jnp.where(valid, logvar_ref[...].astype(jnp.float32), 0.0)
    # masked rows give 1 + 0 - 0 - exp(0) = 0 exactly.
    kl_acc[...] += jnp.sum(1.0 + lv - mu * mu - jnp.exp(lv), axis=0, keepdims=True)

    # ---------------- CLUB: fused heads + per-column moment accumulation ----------------
    sval = jnp.where(valid, s_ref[...].astype(jnp.float32), 0.0)
    zval = jnp.where(valid, z_ref[...].astype(jnp.float32), 0.0)
    proj = jnp.dot(sval, w_ref[...], preferred_element_type=jnp.float32) + b_ref[...]
    mu_q = proj[:, :dz]
    inv_var = jnp.where(valid, jnp.exp(-jnp.tanh(proj[:, dz:])), 0.0)  # masked rows -> 0
    diff = mu_q - zval
    pos_acc[...] += jnp.sum(inv_var * diff * diff, axis=0, keepdims=True)
    iv_mu = inv_var * mu_q
    sz_acc[...] += jnp.sum(zval, axis=0, keepdims=True)
    sz2_acc[...] += jnp.sum(zval * zval, axis=0, keepdims=True)
    siv_acc[...] += jnp.sum(inv_var, axis=0, keepdims=True)
    sivm_acc[...] += jnp.sum(iv_mu, axis=0, keepdims=True)
    sivm2_acc[...] += jnp.sum(iv_mu * mu_q, axis=0, keepdims=True)

    # ---------------- per-core finalize: dump raw partials ----------------
    @pl.when(i == last_i)
    def _finalize():
        ce_s = jnp.sum(ce_acc[...])          # (1,1) -> scalar
        kl_s = jnp.sum(kl_acc[...])          # one cross-lane reduce per core
        pos_s = jnp.sum(pos_acc[...])
        lane = lax.broadcasted_iota(jnp.int32, scal_ref.shape, 2)      # (1,1,8)
        scal_ref[...] = (jnp.where(lane == 0, ce_s, 0.0)
                         + jnp.where(lane == 1, kl_s, 0.0)
                         + jnp.where(lane == 2, pos_s, 0.0))
        mom_ref[...] = jnp.concatenate(
            [sz_acc[...], sz2_acc[...], siv_acc[...], sivm_acc[...], sivm2_acc[...]],
            axis=0).reshape(1, 5, dz)


# ----------------------------------------------------------------------------- wrapper

def _round_up(x, m):
    return ((int(x) + m - 1) // m) * m


def cib_loss(y_pred, y_true, mu, logvar, s, z, club_params,
             gamma_ce=1.0, lambda_kl=0.01, eta_club=0.1, block_rows=None):
    """Pallas CIBLoss forward. Returns the same dict of scalars as the torch module."""
    w_mu, b_mu, w_lv, b_lv = club_params
    B, C = y_pred.shape
    D = mu.shape[1]
    Ds = s.shape[1]
    Dz = z.shape[1]

    # Tiny per-call tensors (labels reshaped, fused CLUB head) - negligible copies.
    y_true2 = y_true.reshape(B, 1).astype(jnp.int32)
    w_cat = jnp.concatenate([jnp.asarray(w_mu, jnp.float32),
                             jnp.asarray(w_lv, jnp.float32)], axis=1)            # (Ds, 2*Dz)
    b_cat = jnp.concatenate([jnp.asarray(b_mu, jnp.float32).reshape(1, -1),
                             jnp.asarray(b_lv, jnp.float32).reshape(1, -1)], axis=1)

    # ---------- generation-aware tile sizing / VMEM budgeting ----------
    try:
        vmem_cap = int(getattr(pltpu.get_tpu_info(), "vmem_capacity_bytes", 64 << 20))
    except Exception:  # pragma: no cover - e.g. interpret mode
        vmem_cap = 64 << 20
    lanes = lambda n: _round_up(n, 128)
    big = (y_pred, mu, logvar, s, z)
    min_item = min(a.dtype.itemsize for a in big)
    row_mult = {4: 8, 2: 16, 1: 32}.get(min_item, 8)          # sublane packing of narrow dtypes
    row_bytes = (y_pred.dtype.itemsize * lanes(C) + 4 * 128
                 + mu.dtype.itemsize * lanes(D) + logvar.dtype.itemsize * lanes(D)
                 + s.dtype.itemsize * lanes(Ds) + z.dtype.itemsize * lanes(Dz))
    weight_bytes = 4 * (Ds * lanes(2 * Dz) + lanes(2 * Dz))
    scratch_bytes = 4 * 8 * (2 * 128 + lanes(D) + 6 * lanes(Dz))
    target_ws = (vmem_cap * 3) // 8                            # ~24 MiB v7x, ~48 MiB v5e/v6e
    budget = max(target_ws - 2 * weight_bytes - scratch_bytes - (2 << 20), 2 << 20)

    if block_rows is not None:
        tb = max(row_mult, _round_up(int(block_rows), row_mult))
    else:
        tb = min(int(budget // (2 * row_bytes)), 1024)
        if tb >= 128:
            tb = (tb // 128) * 128                             # fill the MXU M dimension
        else:
            tb = max(row_mult, (tb // row_mult) * row_mult)
    if tb >= B:
        tb = B                                                 # single full-extent tile

    n_tiles = -(-B // tb)
    nc = 2 if n_tiles >= 2 else 1                              # 2-way "parallel" axis (v7x TCs)
    gp = -(-n_tiles // nc)

    est_use = 2 * row_bytes * tb + 2 * weight_bytes + scratch_bytes + (1 << 20)
    cp_kwargs = dict(dimension_semantics=("parallel", "arbitrary"))
    if est_use > (24 << 20):
        cp_kwargs["vmem_limit_bytes"] = int(min(vmem_cap - (4 << 20), est_use + (16 << 20)))

    # Batch-tiled block index, clamped so a trailing odd tile never DMAs out of bounds;
    # the in-kernel mask (which uses the unclamped index) zeroes the duplicated rows.
    def bmap(c, i):
        return (jnp.minimum(c * gp + i, n_tiles - 1), 0)

    kernel = functools.partial(_cib_partials_kernel,
                               b_real=int(B), tiles_per_core=int(gp), dz=int(Dz))

    in_bytes = sum(int(a.size) * a.dtype.itemsize
                   for a in (y_pred, y_true2, mu, logvar, s, z, w_cat, b_cat))
    cost = pl.CostEstimate(
        flops=int(2 * B * Ds * 2 * Dz + B * (6 * C + 6 * D + 12 * Dz)),
        transcendentals=int(B * (C + D + 2 * Dz)),
        bytes_accessed=int(in_bytes + nc * (8 + 5 * Dz) * 4))

    scal, mom = pl.pallas_call(
        kernel,
        out_shape=(jax.ShapeDtypeStruct((nc, 1, 8), jnp.float32),
                   jax.ShapeDtypeStruct((nc, 5, Dz), jnp.float32)),
        grid_spec=pltpu.PrefetchScalarGridSpec(
            num_scalar_prefetch=0,
            grid=(nc, gp),
            in_specs=[
                pl.BlockSpec((tb, C), bmap),                   # y_pred (native dtype)
                pl.BlockSpec((tb, 1), bmap),                   # y_true (narrow tile; see notes)
                pl.BlockSpec((tb, D), bmap),                   # mu
                pl.BlockSpec((tb, D), bmap),                   # logvar
                pl.BlockSpec((tb, Ds), bmap),                  # s
                pl.BlockSpec((tb, Dz), bmap),                  # z
                # TODO(synk): for very large Ds use pipeline_mode=pl.Buffered(1) (or K-tile the
                # fused head) so the resident weight is not double-buffered.
                pl.BlockSpec((Ds, 2 * Dz), lambda c, i: (0, 0)),   # fused CLUB weight
                pl.BlockSpec((1, 2 * Dz), lambda c, i: (0, 0)),    # fused CLUB bias
            ],
            out_specs=[
                pl.BlockSpec((1, 1, 8), lambda c, i: (c, 0, 0)),    # [ce_sum, kl_sum, pos_sum]
                pl.BlockSpec((1, 5, Dz), lambda c, i: (c, 0, 0)),   # moment rows
            ],
            scratch_shapes=[
                pltpu.VMEM((1, 1), jnp.float32),    # ce sum
                pltpu.VMEM((1, D), jnp.float32),    # kl column sums
                pltpu.VMEM((1, Dz), jnp.float32),   # CLUB positive-term column sums
                pltpu.VMEM((1, Dz), jnp.float32),   # sum z
                pltpu.VMEM((1, Dz), jnp.float32),   # sum z^2
                pltpu.VMEM((1, Dz), jnp.float32),   # sum inv_var
                pltpu.VMEM((1, Dz), jnp.float32),   # sum inv_var * mu_q
                pltpu.VMEM((1, Dz), jnp.float32),   # sum inv_var * mu_q^2
            ]),
        compiler_params=pltpu.CompilerParams(**cp_kwargs),
        cost_estimate=cost,
    )(y_pred, y_true2, mu, logvar, s, z, w_cat, b_cat)

    # ---------- tiny cross-core combine + finalize (plain JAX; ~20 flops) ----------
    inv_b = jnp.float32(1.0 / B)
    ce_sum = jnp.sum(scal[:, 0, 0])
    kl_sum = jnp.sum(scal[:, 0, 1])
    pos_sum = jnp.sum(scal[:, 0, 2])
    sz = jnp.sum(mom[:, 0, :], axis=0)
    sz2 = jnp.sum(mom[:, 1, :], axis=0)
    siv = jnp.sum(mom[:, 2, :], axis=0)
    sivm = jnp.sum(mom[:, 3, :], axis=0)
    sivm2 = jnp.sum(mom[:, 4, :], axis=0)

    pred = ce_sum * inv_b
    kl = -0.5 * kl_sum * inv_b
    z_mean = sz * inv_b
    z2_mean = sz2 * inv_b
    # sum_{i,d} inv_var * mean_j (z_j - mu_q_i)^2, expanded over the moments (exact).
    neg_raw = jnp.sum(siv * z2_mean - 2.0 * z_mean * sivm + sivm2)
    club = -0.5 * inv_b * (pos_sum - neg_raw)
    total = gamma_ce * pred + lambda_kl * kl + eta_club * club
    return {
        'total_loss': total,
        'prediction_loss': pred,
        'kl_loss': kl,
        'disentanglement_loss': club,
    }


# ----------------------------------------------------------------------------- validation

def _reference(y_pred, y_true, mu, logvar, s, z, club_params,
               gamma_ce, lambda_kl, eta_club):
    """Plain-JAX reference (pairwise CLUB) for validation."""
    w_mu, b_mu, w_lv, b_lv = [jnp.asarray(p, jnp.float32) for p in club_params]
    y_pred = y_pred.astype(jnp.float32)
    mu = mu.astype(jnp.float32); logvar = logvar.astype(jnp.float32)
    s = s.astype(jnp.float32); z = z.astype(jnp.float32)
    B = y_true.shape[0]
    logp = jax.nn.log_softmax(y_pred, axis=-1)
    pred = -jnp.mean(jnp.take_along_axis(logp, y_true.reshape(-1, 1), axis=-1))
    kl = (-0.5 * jnp.sum(1.0 + logvar - mu ** 2 - jnp.exp(logvar))) / B
    mu_q = jnp.dot(s, w_mu, precision=lax.Precision.HIGHEST) + b_mu.reshape(1, -1)
    logvar_q = jnp.tanh(jnp.dot(s, w_lv, precision=lax.Precision.HIGHEST) + b_lv.reshape(1, -1))
    pos = -0.5 * (mu_q - z) ** 2 / jnp.exp(logvar_q)
    neg = -0.5 * jnp.mean((z[None, :, :] - mu_q[:, None, :]) ** 2, axis=1) / jnp.exp(logvar_q)
    club = jnp.mean(jnp.sum(pos - neg, axis=-1))
    total = gamma_ce * pred + lambda_kl * kl + eta_club * club
    return total, pred, kl, club


def _check(out, ref):
    ref_total, ref_pred, ref_kl, ref_club = ref
    assert jnp.allclose(out['prediction_loss'], ref_pred, rtol=2e-3, atol=2e-3)
    assert jnp.allclose(out['kl_loss'], ref_kl, rtol=2e-3, atol=2e-3)
    assert jnp.allclose(out['disentanglement_loss'], ref_club, rtol=2e-3, atol=2e-3)
    assert jnp.allclose(out['total_loss'], ref_total, rtol=2e-3, atol=2e-3)


def _make_inputs(key, B, C, D, DS, DZ, dtype=jnp.float32):
    ks = jax.random.split(key, 8)
    y_pred = jax.random.normal(ks[0], (B, C), jnp.float32).astype(dtype)
    y_true = jax.random.randint(ks[1], (B,), 0, C, jnp.int32)
    mu = jax.random.normal(ks[2], (B, D), jnp.float32).astype(dtype)
    logvar = (0.1 * jax.random.normal(ks[3], (B, D), jnp.float32)).astype(dtype)
    s = jax.random.normal(ks[4], (B, DS), jnp.float32).astype(dtype)
    z = jax.random.normal(ks[5], (B, DZ), jnp.float32).astype(dtype)
    # Synthetic deterministic CLUB estimator parameters (linear mu / tanh-logvar heads).
    w_mu = 0.1 * jax.random.normal(ks[6], (DS, DZ), jnp.float32)
    b_mu = jnp.zeros((1, DZ), jnp.float32)
    w_lv = 0.1 * jax.random.normal(ks[7], (DS, DZ), jnp.float32)
    b_lv = jnp.zeros((1, DZ), jnp.float32)
    return y_pred, y_true, mu, logvar, s, z, (w_mu, b_mu, w_lv, b_lv)


if __name__ == "__main__":
    gamma_ce, lambda_kl, eta_club = 1.0, 0.01, 0.1
    key = jax.random.PRNGKey(0)
    k1, k2, k3 = jax.random.split(key, 3)

    # Case 1: small f32 shapes, single tile, single core-group.
    args1 = _make_inputs(k1, B=8, C=16, D=32, DS=32, DZ=32)
    out1 = jax.block_until_ready(
        cib_loss(*args1, gamma_ce=gamma_ce, lambda_kl=lambda_kl, eta_club=eta_club))
    _check(out1, _reference(*args1, gamma_ce, lambda_kl, eta_club))

    # Case 2: B not a multiple of the tile, odd tile count -> exercises the 2-way "parallel"
    # core axis, the clamped duplicate tile, and partial-tile masking (CE/KL/CLUB).
    args2 = _make_inputs(k2, B=21, C=16, D=32, DS=32, DZ=32)
    out2 = jax.block_until_ready(
        cib_loss(*args2, gamma_ce=gamma_ce, lambda_kl=lambda_kl, eta_club=eta_club,
                 block_rows=8))
    _check(out2, _reference(*args2, gamma_ce, lambda_kl, eta_club))

    # Case 3: bf16 activations consumed in native dtype (upcast happens inside the kernel),
    # partial bf16 last tile, two tiles split across the parallel axis.
    args3 = _make_inputs(k3, B=24, C=16, D=32, DS=32, DZ=32, dtype=jnp.bfloat16)
    out3 = jax.block_until_ready(
        cib_loss(*args3, gamma_ce=gamma_ce, lambda_kl=lambda_kl, eta_club=eta_club,
                 block_rows=16))
    _check(out3, _reference(*args3, gamma_ce, lambda_kl, eta_club))

    print("KERNEL_OK")
</pallas_src>

<mosaic_0001>
module attributes {stable_mosaic.version = 11 : i64} {
  func.func @_cib_partials_kernel(%arg0: i32, %arg1: i32, %arg2: memref<8x16xf32, #tpu.memory_space<vmem>>, %arg3: memref<8x1xi32, #tpu.memory_space<vmem>>, %arg4: memref<8x32xf32, #tpu.memory_space<vmem>>, %arg5: memref<8x32xf32, #tpu.memory_space<vmem>>, %arg6: memref<8x32xf32, #tpu.memory_space<vmem>>, %arg7: memref<8x32xf32, #tpu.memory_space<vmem>>, %arg8: memref<32x64xf32, #tpu.memory_space<vmem>>, %arg9: memref<1x64xf32, #tpu.memory_space<vmem>>, %arg10: memref<1x1x8xf32, #tpu.memory_space<vmem>>, %arg11: memref<1x5x32xf32, #tpu.memory_space<vmem>>, %arg12: memref<1x1xf32, #tpu.memory_space<vmem>>, %arg13: memref<1x32xf32, #tpu.memory_space<vmem>>, %arg14: memref<1x32xf32, #tpu.memory_space<vmem>>, %arg15: memref<1x32xf32, #tpu.memory_space<vmem>>, %arg16: memref<1x32xf32, #tpu.memory_space<vmem>>, %arg17: memref<1x32xf32, #tpu.memory_space<vmem>>, %arg18: memref<1x32xf32, #tpu.memory_space<vmem>>, %arg19: memref<1x32xf32, #tpu.memory_space<vmem>>) attributes {dimension_semantics = [#tpu.dimension_semantics<parallel>, #tpu.dimension_semantics<arbitrary>], iteration_bounds = array<i64: 1, 1>, scalar_prefetch = 0 : i64, scratch_operands = 8 : i64, tpu.core_type = #tpu.core_type<tc>, window_params = [{transform_indices = @transform_0, window_bounds = array<i64: 8, 16>}, {transform_indices = @transform_1, window_bounds = array<i64: 8, 1>}, {transform_indices = @transform_2, window_bounds = array<i64: 8, 32>}, {transform_indices = @transform_3, window_bounds = array<i64: 8, 32>}, {transform_indices = @transform_4, window_bounds = array<i64: 8, 32>}, {transform_indices = @transform_5, window_bounds = array<i64: 8, 32>}, {pipeline_mode = #tpu.pipeline_mode<synchronous>, transform_indices = @transform_6, window_bounds = array<i64: 32, 64>}, {pipeline_mode = #tpu.pipeline_mode<synchronous>, transform_indices = @transform_7, window_bounds = array<i64: 1, 64>}, {transform_indices = @transform_8, window_bounds = array<i64: 1, 1, 8>}, {transform_indices = @transform_9, window_bounds = array<i64: 1, 5, 32>}]} {
    %c0_i32 = arith.constant 0 : i32
    %0 = arith.cmpi eq, %arg1, %c0_i32 : i32
    %1 = arith.extui %0 : i1 to i32
    %c0_i32_0 = arith.constant 0 : i32
    %2 = arith.cmpi ne, %1, %c0_i32_0 : i32
    scf.if %2 {
      %cst_72 = arith.constant 0.000000e+00 : f32
      %125 = vector.broadcast %cst_72 : f32 to vector<1x1xf32>
      %c0_73 = arith.constant 0 : index
      %c0_74 = arith.constant 0 : index
      %126 = vector.load %arg12[%c0_73, %c0_74] : memref<1x1xf32, #tpu.memory_space<vmem>>, vector<1x1xf32>
      tpu.vector_store %arg12[%c0_73, %c0_74], %125 {strides = array<i32>} : memref<1x1xf32, #tpu.memory_space<vmem>>, vector<1x1xf32>,
      %cst_75 = arith.constant 0.000000e+00 : f32
      %127 = vector.broadcast %cst_75 : f32 to vector<1x32xf32>
      %c0_76 = arith.constant 0 : index
      %c0_77 = arith.constant 0 : index
      %128 = vector.load %arg13[%c0_76, %c0_77] : memref<1x32xf32, #tpu.memory_space<vmem>>, vector<1x32xf32>
      tpu.vector_store %arg13[%c0_76, %c0_77], %127 {strides = array<i32>} : memref<1x32xf32, #tpu.memory_space<vmem>>, vector<1x32xf32>,
      %cst_78 = arith.constant 0.000000e+00 : f32
      %129 = vector.broadcast %cst_78 : f32 to vector<1x32xf32>
      %c0_79 = arith.constant 0 : index
      %c0_80 = arith.constant 0 : index
      %130 = vector.load %arg14[%c0_79, %c0_80] : memref<1x32xf32, #tpu.memory_space<vmem>>, vector<1x32xf32>
      tpu.vector_store %arg14[%c0_79, %c0_80], %129 {strides = array<i32>} : memref<1x32xf32, #tpu.memory_space<vmem>>, vector<1x32xf32>,
      %cst_81 = arith.constant 0.000000e+00 : f32
      %131 = vector.broadcast %cst_81 : f32 to vector<1x32xf32>
      %c0_82 = arith.constant 0 : index
      %c0_83 = arith.constant 0 : index
      %132 = vector.load %arg15[%c0_82, %c0_83] : memref<1x32xf32, #tpu.memory_space<vmem>>, vector<1x32xf32>
      tpu.vector_store %arg15[%c0_82, %c0_83], %131 {strides = array<i32>} : memref<1x32xf32, #tpu.memory_space<vmem>>, vector<1x32xf32>,
      %cst_84 = arith.constant 0.000000e+00 : f32
      %133 = vector.broadcast %cst_84 : f32 to vector<1x32xf32>
      %c0_85 = arith.constant 0 : index
      %c0_86 = arith.constant 0 : index
      %134 = vector.load %arg16[%c0_85, %c0_86] : memref<1x32xf32, #tpu.memory_space<vmem>>, vector<1x32xf32>
      tpu.vector_store %arg16[%c0_85, %c0_86], %133 {strides = array<i32>} : memref<1x32xf32, #tpu.memory_space<vmem>>, vector<1x32xf32>,
      %cst_87 = arith.constant 0.000000e+00 : f32
      %135 = vector.broadcast %cst_87 : f32 to vector<1x32xf32>
      %c0_88 = arith.constant 0 : index
      %c0_89 = arith.constant 0 : index
      %136 = vector.load %arg17[%c0_88, %c0_89] : memref<1x32xf32, #tpu.memory_space<vmem>>, vector<1x32xf32>
      tpu.vector_store %arg17[%c0_88, %c0_89], %135 {strides = array<i32>} : memref<1x32xf32, #tpu.memory_space<vmem>>, vector<1x32xf32>,
      %cst_90 = arith.constant 0.000000e+00 : f32
      %137 = vector.broadcast %cst_90 : f32 to vector<1x32xf32>
      %c0_91 = arith.constant 0 : index
      %c0_92 = arith.constant 0 : index
      %138 = vector.load %arg18[%c0_91, %c0_92] : memref<1x32xf32, #tpu.memory_space<vmem>>, vector<1x32xf32>
      tpu.vector_store %arg18[%c0_91, %c0_92], %137 {strides = array<i32>} : memref<1x32xf32, #tpu.memory_space<vmem>>, vector<1x32xf32>,
      %cst_93 = arith.constant 0.000000e+00 : f32
      %139 = vector.broadcast %cst_93 : f32 to vector<1x32xf32>
      %c0_94 = arith.constant 0 : index
      %c0_95 = arith.constant 0 : index
      %140 = vector.load %arg19[%c0_94, %c0_95] : memref<1x32xf32, #tpu.memory_space<vmem>>, vector<1x32xf32>
      tpu.vector_store %arg19[%c0_94, %c0_95], %139 {strides = array<i32>} : memref<1x32xf32, #tpu.memory_space<vmem>>, vector<1x32xf32>,
    } else {
    }
    %c1_i32 = arith.constant 1 : i32
    %3 = arith.muli %arg0, %c1_i32 : i32
    %4 = arith.addi %3, %arg1 : i32
    %c8_i32 = arith.constant 8 : i32
    %5 = arith.muli %4, %c8_i32 : i32
    %6 = tpu.iota {dimensions = array<i32: 0>} : vector<8x1xi32>
    %7 = vector.broadcast %5 : i32 to vector<8x1xi32>
    %8 = arith.addi %7, %6 : vector<8x1xi32>
    %c8_i32_1 = arith.constant 8 : i32
    %9 = vector.broadcast %c8_i32_1 : i32 to vector<8x1xi32>
    %10 = arith.cmpi slt, %8, %9 : vector<8x1xi32>
    %c0 = arith.constant 0 : index
    %c0_2 = arith.constant 0 : index
    %11 = vector.load %arg2[%c0, %c0_2] : memref<8x16xf32, #tpu.memory_space<vmem>>, vector<8x16xf32>
    %cst = arith.constant 0.000000e+00 : f32
    %12 = vector.shape_cast %10 : vector<8x1xi1> to vector<8x1xi1>
    %13 = vector.broadcast %12 : vector<8x1xi1> to vector<8x16xi1>
    %14 = vector.broadcast %cst : f32 to vector<8x16xf32>
    %15 = arith.select %13, %11, %14 : vector<8x16xi1>, vector<8x16xf32>
    %16 = tpu.iota {dimensions = array<i32: 1>} : vector<8x16xi32>
    %cst_3 = arith.constant dense<0xFF800000> : vector<8xf32>
    %17 = vector.multi_reduction <maximumf>, %15, %cst_3 [1] : vector<8x16xf32> to vector<8xf32>
    %18 = vector.shape_cast %17 : vector<8xf32> to vector<8x1xf32>
    %19 = vector.broadcast %18 : vector<8x1xf32> to vector<8x16xf32>
    %20 = arith.subf %15, %19 : vector<8x16xf32>
    %21 = math.exp %20 : vector<8x16xf32>
    %cst_4 = arith.constant dense<0.000000e+00> : vector<8xf32>
    %22 = vector.multi_reduction <add>, %21, %cst_4 [1] : vector<8x16xf32> to vector<8xf32>
    %23 = vector.shape_cast %22 : vector<8xf32> to vector<8x1xf32>
    %24 = math.log %23 : vector<8x1xf32>
    %c0_5 = arith.constant 0 : index
    %c0_6 = arith.constant 0 : index
    %25 = vector.load %arg3[%c0_5, %c0_6] : memref<8x1xi32, #tpu.memory_space<vmem>>, vector<8x1xi32>
    %26 = vector.broadcast %25 : vector<8x1xi32> to vector<8x16xi32>
    %27 = arith.cmpi eq, %16, %26 : vector<8x16xi32>
    %cst_7 = arith.constant 0.000000e+00 : f32
    %28 = vector.broadcast %cst_7 : f32 to vector<8x16xf32>
    %29 = arith.select %27, %20, %28 : vector<8x16xi1>, vector<8x16xf32>
    %cst_8 = arith.constant dense<0.000000e+00> : vector<8xf32>
    %30 = vector.multi_reduction <add>, %29, %cst_8 [1] : vector<8x16xf32> to vector<8xf32>
    %31 = vector.shape_cast %30 : vector<8xf32> to vector<8x1xf32>
    %32 = arith.subf %24, %31 : vector<8x1xf32>
    %cst_9 = arith.constant 0.000000e+00 : f32
    %33 = vector.broadcast %cst_9 : f32 to vector<8x1xf32>
    %34 = arith.select %10, %32, %33 : vector<8x1xi1>, vector<8x1xf32>
    %c0_10 = arith.constant 0 : index
    %c0_11 = arith.constant 0 : index
    %35 = vector.load %arg12[%c0_10, %c0_11] : memref<1x1xf32, #tpu.memory_space<vmem>>, vector<1x1xf32>
    %cst_12 = arith.constant dense<0.000000e+00> : vector<1xf32>
    %36 = vector.multi_reduction <add>, %34, %cst_12 [0] : vector<8x1xf32> to vector<1xf32>
    %37 = vector.shape_cast %36 : vector<1xf32> to vector<1x1xf32>
    %38 = arith.addf %35, %37 : vector<1x1xf32>
    %c0_13 = arith.constant 0 : index
    %c0_14 = arith.constant 0 : index
    %39 = vector.load %arg12[%c0_13, %c0_14] : memref<1x1xf32, #tpu.memory_space<vmem>>, vector<1x1xf32>
    tpu.vector_store %arg12[%c0_13, %c0_14], %38 {strides = array<i32>} : memref<1x1xf32, #tpu.memory_space<vmem>>, vector<1x1xf32>,
    %c0_15 = arith.constant 0 : index
    %c0_16 = arith.constant 0 : index
    %40 = vector.load %arg4[%c0_15, %c0_16] : memref<8x32xf32, #tpu.memory_space<vmem>>, vector<8x32xf32>
    %cst_17 = arith.constant 0.000000e+00 : f32
    %41 = vector.shape_cast %10 : vector<8x1xi1> to vector<8x1xi1>
    %42 = vector.broadcast %41 : vector<8x1xi1> to vector<8x32xi1>
    %43 = vector.broadcast %cst_17 : f32 to vector<8x32xf32>
    %44 = arith.select %42, %40, %43 : vector<8x32xi1>, vector<8x32xf32>
    %c0_18 = arith.constant 0 : index
    %c0_19 = arith.constant 0 : index
    %45 = vector.load %arg5[%c0_18, %c0_19] : memref<8x32xf32, #tpu.memory_space<vmem>>, vector<8x32xf32>
    %cst_20 = arith.constant 0.000000e+00 : f32
    %46 = vector.shape_cast %10 : vector<8x1xi1> to vector<8x1xi1>
    %47 = vector.broadcast %46 : vector<8x1xi1> to vector<8x32xi1>
    %48 = vector.broadcast %cst_20 : f32 to vector<8x32xf32>
    %49 = arith.select %47, %45, %48 : vector<8x32xi1>, vector<8x32xf32>
    %c0_21 = arith.constant 0 : index
    %c0_22 = arith.constant 0 : index
    %50 = vector.load %arg13[%c0_21, %c0_22] : memref<1x32xf32, #tpu.memory_space<vmem>>, vector<1x32xf32>
    %cst_23 = arith.constant 1.000000e+00 : f32
    %51 = vector.broadcast %cst_23 : f32 to vector<8x32xf32>
    %52 = arith.addf %51, %49 : vector<8x32xf32>
    %53 = arith.mulf %44, %44 : vector<8x32xf32>
    %54 = arith.subf %52, %53 : vector<8x32xf32>
    %55 = math.exp %49 : vector<8x32xf32>
    %56 = arith.subf %54, %55 : vector<8x32xf32>
    %cst_24 = arith.constant dense<0.000000e+00> : vector<32xf32>
    %57 = vector.multi_reduction <add>, %56, %cst_24 [0] : vector<8x32xf32> to vector<32xf32>
    %58 = vector.shape_cast %57 : vector<32xf32> to vector<1x32xf32>
    %59 = arith.addf %50, %58 : vector<1x32xf32>
    %c0_25 = arith.constant 0 : index
    %c0_26 = arith.constant 0 : index
    %60 = vector.load %arg13[%c0_25, %c0_26] : memref<1x32xf32, #tpu.memory_space<vmem>>, vector<1x32xf32>
    tpu.vector_store %arg13[%c0_25, %c0_26], %59 {strides = array<i32>} : memref<1x32xf32, #tpu.memory_space<vmem>>, vector<1x32xf32>,
    %c0_27 = arith.constant 0 : index
    %c0_28 = arith.constant 0 : index
    %61 = vector.load %arg6[%c0_27, %c0_28] : memref<8x32xf32, #tpu.memory_space<vmem>>, vector<8x32xf32>
    %cst_29 = arith.constant 0.000000e+00 : f32
    %62 = vector.shape_cast %10 : vector<8x1xi1> to vector<8x1xi1>
    %63 = vector.broadcast %62 : vector<8x1xi1> to vector<8x32xi1>
    %64 = vector.broadcast %cst_29 : f32 to vector<8x32xf32>
    %65 = arith.select %63, %61, %64 : vector<8x32xi1>, vector<8x32xf32>
    %c0_30 = arith.constant 0 : index
    %c0_31 = arith.constant 0 : index
    %66 = vector.load %arg7[%c0_30, %c0_31] : memref<8x32xf32, #tpu.memory_space<vmem>>, vector<8x32xf32>
    %cst_32 = arith.constant 0.000000e+00 : f32
    %67 = vector.shape_cast %10 : vector<8x1xi1> to vector<8x1xi1>
    %68 = vector.broadcast %67 : vector<8x1xi1> to vector<8x32xi1>
    %69 = vector.broadcast %cst_32 : f32 to vector<8x32xf32>
    %70 = arith.select %68, %66, %69 : vector<8x32xi1>, vector<8x32xf32>
    %c0_33 = arith.constant 0 : index
    %c0_34 = arith.constant 0 : index
    %71 = vector.load %arg8[%c0_33, %c0_34] : memref<32x64xf32, #tpu.memory_space<vmem>>, vector<32x64xf32>
    %cst_35 = arith.constant dense<0.000000e+00> : vector<8x64xf32>
    %72 = tpu.matmul %65, %71, %cst_35 {dimension_numbers = #tpu.dot_dimension_numbers<[1], [0], [0], [1], [0, 0, 1, 1], [], []>} : vector<8x32xf32>, vector<32x64xf32>, vector<8x64xf32> -> vector<8x64xf32>
    %c0_36 = arith.constant 0 : index
    %c0_37 = arith.constant 0 : index
    %73 = vector.load %arg9[%c0_36, %c0_37] : memref<1x64xf32, #tpu.memory_space<vmem>>, vector<1x64xf32>
    %74 = vector.broadcast %73 : vector<1x64xf32> to vector<8x64xf32>
    %75 = arith.addf %72, %74 : vector<8x64xf32>
    %76 = vector.extract_strided_slice %75 {offsets = [0, 0], sizes = [8, 32], strides = [1, 1]} : vector<8x64xf32> to vector<8x32xf32>
    %77 = vector.extract_strided_slice %75 {offsets = [0, 32], sizes = [8, 32], strides = [1, 1]} : vector<8x64xf32> to vector<8x32xf32>
    %78 = math.tanh %77 : vector<8x32xf32>
    %cst_38 = arith.constant 0.000000e+00 : f32
    %79 = vector.broadcast %cst_38 : f32 to vector<8x32xf32>
    %80 = arith.subf %79, %78 : vector<8x32xf32>
    %81 = math.exp %80 : vector<8x32xf32>
    %cst_39 = arith.constant 0.000000e+00 : f32
    %82 = vector.shape_cast %10 : vector<8x1xi1> to vector<8x1xi1>
    %83 = vector.broadcast %82 : vector<8x1xi1> to vector<8x32xi1>
    %84 = vector.broadcast %cst_39 : f32 to vector<8x32xf32>
    %85 = arith.select %83, %81, %84 : vector<8x32xi1>, vector<8x32xf32>
    %86 = arith.subf %76, %70 : vector<8x32xf32>
    %c0_40 = arith.constant 0 : index
    %c0_41 = arith.constant 0 : index
    %87 = vector.load %arg14[%c0_40, %c0_41] : memref<1x32xf32, #tpu.memory_space<vmem>>, vector<1x32xf32>
    %88 = arith.mulf %85, %86 : vector<8x32xf32>
    %89 = arith.mulf %88, %86 : vector<8x32xf32>
    %cst_42 = arith.constant dense<0.000000e+00> : vector<32xf32>
    %90 = vector.multi_reduction <add>, %89, %cst_42 [0] : vector<8x32xf32> to vector<32xf32>
    %91 = vector.shape_cast %90 : vector<32xf32> to vector<1x32xf32>
    %92 = arith.addf %87, %91 : vector<1x32xf32>
    %c0_43 = arith.constant 0 : index
    %c0_44 = arith.constant 0 : index
    %93 = vector.load %arg14[%c0_43, %c0_44] : memref<1x32xf32, #tpu.memory_space<vmem>>, vector<1x32xf32>
    tpu.vector_store %arg14[%c0_43, %c0_44], %92 {strides = array<i32>} : memref<1x32xf32, #tpu.memory_space<vmem>>, vector<1x32xf32>,
    %94 = arith.mulf %85, %76 : vector<8x32xf32>
    %c0_45 = arith.constant 0 : index
    %c0_46 = arith.constant 0 : index
    %95 = vector.load %arg15[%c0_45, %c0_46] : memref<1x32xf32, #tpu.memory_space<vmem>>, vector<1x32xf32>
    %cst_47 = arith.constant dense<0.000000e+00> : vector<32xf32>
    %96 = vector.multi_reduction <add>, %70, %cst_47 [0] : vector<8x32xf32> to vector<32xf32>
    %97 = vector.shape_cast %96 : vector<32xf32> to vector<1x32xf32>
    %98 = arith.addf %95, %97 : vector<1x32xf32>
    %c0_48 = arith.constant 0 : index
    %c0_49 = arith.constant 0 : index
    %99 = vector.load %arg15[%c0_48, %c0_49] : memref<1x32xf32, #tpu.memory_space<vmem>>, vector<1x32xf32>
    tpu.vector_store %arg15[%c0_48, %c0_49], %98 {strides = array<i32>} : memref<1x32xf32, #tpu.memory_space<vmem>>, vector<1x32xf32>,
    %c0_50 = arith.constant 0 : index
    %c0_51 = arith.constant 0 : index
    %100 = vector.load %arg16[%c0_50, %c0_51] : memref<1x32xf32, #tpu.memory_space<vmem>>, vector<1x32xf32>
    %101 = arith.mulf %70, %70 : vector<8x32xf32>
    %cst_52 = arith.constant dense<0.000000e+00> : vector<32xf32>
    %102 = vector.multi_reduction <add>, %101, %cst_52 [0] : vector<8x32xf32> to vector<32xf32>
    %103 = vector.shape_cast %102 : vector<32xf32> to vector<1x32xf32>
    %104 = arith.addf %100, %103 : vector<1x32xf32>
    %c0_53 = arith.constant 0 : index
    %c0_54 = arith.constant 0 : index
    %105 = vector.load %arg16[%c0_53, %c0_54] : memref<1x32xf32, #tpu.memory_space<vmem>>, vector<1x32xf32>
    tpu.vector_store %arg16[%c0_53, %c0_54], %104 {strides = array<i32>} : memref<1x32xf32, #tpu.memory_space<vmem>>, vector<1x32xf32>,
    %c0_55 = arith.constant 0 : index
    %c0_56 = arith.constant 0 : index
    %106 = vector.load %arg17[%c0_55, %c0_56] : memref<1x32xf32, #tpu.memory_space<vmem>>, vector<1x32xf32>
    %cst_57 = arith.constant dense<0.000000e+00> : vector<32xf32>
    %107 = vector.multi_reduction <add>, %85, %cst_57 [0] : vector<8x32xf32> to vector<32xf32>
    %108 = vector.shape_cast %107 : vector<32xf32> to vector<1x32xf32>
    %109 = arith.addf %106, %108 : vector<1x32xf32>
    %c0_58 = arith.constant 0 : index
    %c0_59 = arith.constant 0 : index
    %110 = vector.load %arg17[%c0_58, %c0_59] : memref<1x32xf32, #tpu.memory_space<vmem>>, vector<1x32xf32>
    tpu.vector_store %arg17[%c0_58, %c0_59], %109 {strides = array<i32>} : memref<1x32xf32, #tpu.memory_space<vmem>>, vector<1x32xf32>,
    %c0_60 = arith.constant 0 : index
    %c0_61 = arith.constant 0 : index
    %111 = vector.load %arg18[%c0_60, %c0_61] : memref<1x32xf32, #tpu.memory_space<vmem>>, vector<1x32xf32>
    %cst_62 = arith.constant dense<0.000000e+00> : vector<32xf32>
    %112 = vector.multi_reduction <add>, %94, %cst_62 [0] : vector<8x32xf32> to vector<32xf32>
    %113 = vector.shape_cast %112 : vector<32xf32> to vector<1x32xf32>
    %114 = arith.addf %111, %113 : vector<1x32xf32>
    %c0_63 = arith.constant 0 : index
    %c0_64 = arith.constant 0 : index
    %115 = vector.load %arg18[%c0_63, %c0_64] : memref<1x32xf32, #tpu.memory_space<vmem>>, vector<1x32xf32>
    tpu.vector_store %arg18[%c0_63, %c0_64], %114 {strides = array<i32>} : memref<1x32xf32, #tpu.memory_space<vmem>>, vector<1x32xf32>,
    %c0_65 = arith.constant 0 : index
    %c0_66 = arith.constant 0 : index
    %116 = vector.load %arg19[%c0_65, %c0_66] : memref<1x32xf32, #tpu.memory_space<vmem>>, vector<1x32xf32>
    %117 = arith.mulf %94, %76 : vector<8x32xf32>
    %cst_67 = arith.constant dense<0.000000e+00> : vector<32xf32>
    %118 = vector.multi_reduction <add>, %117, %cst_67 [0] : vector<8x32xf32> to vector<32xf32>
    %119 = vector.shape_cast %118 : vector<32xf32> to vector<1x32xf32>
    %120 = arith.addf %116, %119 : vector<1x32xf32>
    %c0_68 = arith.constant 0 : index
    %c0_69 = arith.constant 0 : index
    %121 = vector.load %arg19[%c0_68, %c0_69] : memref<1x32xf32, #tpu.memory_space<vmem>>, vector<1x32xf32>
    tpu.vector_store %arg19[%c0_68, %c0_69], %120 {strides = array<i32>} : memref<1x32xf32, #tpu.memory_space<vmem>>, vector<1x32xf32>,
    %c0_i32_70 = arith.constant 0 : i32
    %122 = arith.cmpi eq, %arg1, %c0_i32_70 : i32
    %123 = arith.extui %122 : i1 to i32
    %c0_i32_71 = arith.constant 0 : i32
    %124 = arith.cmpi ne, %123, %c0_i32_71 : i32
    scf.if %124 {
      %c0_72 = arith.constant 0 : index
      %c0_73 = arith.constant 0 : index
      %125 = vector.load %arg12[%c0_72, %c0_73] : memref<1x1xf32, #tpu.memory_space<vmem>>, vector<1x1xf32>
      %126 = vector.shape_cast %125 : vector<1x1xf32> to vector<1x1x1xf32>
      %cst_74 = arith.constant dense<0.000000e+00> : vector<1xf32>
      %127 = vector.multi_reduction <add>, %126, %cst_74 [1, 2] : vector<1x1x1xf32> to vector<1xf32>
      %128 = vector.shape_cast %127 : vector<1xf32> to vector<1x1x1xf32>
      %129 = vector.extract %128[0, 0, 0] : f32 from vector<1x1x1xf32>
      %c0_75 = arith.constant 0 : index
      %c0_76 = arith.constant 0 : index
      %130 = vector.load %arg13[%c0_75, %c0_76] : memref<1x32xf32, #tpu.memory_space<vmem>>, vector<1x32xf32>
      %131 = vector.shape_cast %130 : vector<1x32xf32> to vector<1x1x32xf32>
      %cst_77 = arith.constant dense<0.000000e+00> : vector<1xf32>
      %132 = vector.multi_reduction <add>, %131, %cst_77 [1, 2] : vector<1x1x32xf32> to vector<1xf32>
      %133 = vector.shape_cast %132 : vector<1xf32> to vector<1x1x1xf32>
      %134 = vector.extract %133[0, 0, 0] : f32 from vector<1x1x1xf32>
      %c0_78 = arith.constant 0 : index
      %c0_79 = arith.constant 0 : index
      %135 = vector.load %arg14[%c0_78, %c0_79] : memref<1x32xf32, #tpu.memory_space<vmem>>, vector<1x32xf32>
      %136 = vector.shape_cast %135 : vector<1x32xf32> to vector<1x1x32xf32>
      %cst_80 = arith.constant dense<0.000000e+00> : vector<1xf32>
      %137 = vector.multi_reduction <add>, %136, %cst_80 [1, 2] : vector<1x1x32xf32> to vector<1xf32>
      %138 = vector.shape_cast %137 : vector<1xf32> to vector<1x1x1xf32>
      %139 = vector.extract %138[0, 0, 0] : f32 from vector<1x1x1xf32>
      %140 = tpu.iota {dimensions = array<i32: 2>} : vector<1x1x8xi32>
      %c0_i32_81 = arith.constant 0 : i32
      %141 = vector.broadcast %c0_i32_81 : i32 to vector<1x1x8xi32>
      %142 = arith.cmpi eq, %140, %141 : vector<1x1x8xi32>
      %cst_82 = arith.constant 0.000000e+00 : f32
      %143 = vector.broadcast %129 : f32 to vector<1x1x8xf32>
      %144 = vector.broadcast %cst_82 : f32 to vector<1x1x8xf32>
      %145 = arith.select %142, %143, %144 : vector<1x1x8xi1>, vector<1x1x8xf32>
      %c1_i32_83 = arith.constant 1 : i32
      %146 = vector.broadcast %c1_i32_83 : i32 to vector<1x1x8xi32>
      %147 = arith.cmpi eq, %140, %146 : vector<1x1x8xi32>
      %cst_84 = arith.constant 0.000000e+00 : f32
      %148 = vector.broadcast %134 : f32 to vector<1x1x8xf32>
      %149 = vector.broadcast %cst_84 : f32 to vector<1x1x8xf32>
      %150 = arith.select %147, %148, %149 : vector<1x1x8xi1>, vector<1x1x8xf32>
      %151 = arith.addf %145, %150 : vector<1x1x8xf32>
      %c2_i32 = arith.constant 2 : i32
      %152 = vector.broadcast %c2_i32 : i32 to vector<1x1x8xi32>
      %153 = arith.cmpi eq, %140, %152 : vector<1x1x8xi32>
      %cst_85 = arith.constant 0.000000e+00 : f32
      %154 = vector.broadcast %139 : f32 to vector<1x1x8xf32>
      %155 = vector.broadcast %cst_85 : f32 to vector<1x1x8xf32>
      %156 = arith.select %153, %154, %155 : vector<1x1x8xi1>, vector<1x1x8xf32>
      %157 = arith.addf %151, %156 : vector<1x1x8xf32>
      %c0_86 = arith.constant 0 : index
      %c0_87 = arith.constant 0 : index
      %c0_88 = arith.constant 0 : index
      %158 = vector.load %arg10[%c0_86, %c0_87, %c0_88] : memref<1x1x8xf32, #tpu.memory_space<vmem>>, vector<1x1x8xf32>
      tpu.vector_store %arg10[%c0_86, %c0_87, %c0_88], %157 {strides = array<i32>} : memref<1x1x8xf32, #tpu.memory_space<vmem>>, vector<1x1x8xf32>,
      %c0_89 = arith.constant 0 : index
      %c0_90 = arith.constant 0 : index
      %159 = vector.load %arg15[%c0_89, %c0_90] : memref<1x32xf32, #tpu.memory_space<vmem>>, vector<1x32xf32>
      %c0_91 = arith.constant 0 : index
      %c0_92 = arith.constant 0 : index
      %160 = vector.load %arg16[%c0_91, %c0_92] : memref<1x32xf32, #tpu.memory_space<vmem>>, vector<1x32xf32>
      %c0_93 = arith.constant 0 : index
      %c0_94 = arith.constant 0 : index
      %161 = vector.load %arg17[%c0_93, %c0_94] : memref<1x32xf32, #tpu.memory_space<vmem>>, vector<1x32xf32>
      %c0_95 = arith.constant 0 : index
      %c0_96 = arith.constant 0 : index
      %162 = vector.load %arg18[%c0_95, %c0_96] : memref<1x32xf32, #tpu.memory_space<vmem>>, vector<1x32xf32>
      %c0_97 = arith.constant 0 : index
      %c0_98 = arith.constant 0 : index
      %163 = vector.load %arg19[%c0_97, %c0_98] : memref<1x32xf32, #tpu.memory_space<vmem>>, vector<1x32xf32>
      %164 = tpu.concatenate %159, %160, %161, %162, %163 in 0 : vector<1x32xf32>, vector<1x32xf32>, vector<1x32xf32>, vector<1x32xf32>, vector<1x32xf32> -> vector<5x32xf32>
      %165 = vector.shape_cast %164 : vector<5x32xf32> to vector<1x5x32xf32>
      %c0_99 = arith.constant 0 : index
      %c0_100 = arith.constant 0 : index
      %c0_101 = arith.constant 0 : index
      %166 = vector.load %arg11[%c0_99, %c0_100, %c0_101] : memref<1x5x32xf32, #tpu.memory_space<vmem>>, vector<1x5x32xf32>
      tpu.vector_store %arg11[%c0_99, %c0_100, %c0_101], %165 {strides = array<i32>} : memref<1x5x32xf32, #tpu.memory_space<vmem>>, vector<1x5x32xf32>,
    } else {
    }
    return
  }
  func.func @transform_0(%arg0: i32, %arg1: i32) -> (i32, i32) {
    %c1_i32 = arith.constant 1 : i32
    %0 = arith.muli %arg0, %c1_i32 : i32
    %1 = arith.addi %0, %arg1 : i32
    %c0_i32 = arith.constant 0 : i32
    %2 = arith.minsi %1, %c0_i32 : i32
    %c0_i32_0 = arith.constant 0 : i32
    %c0_i32_1 = arith.constant 0 : i32
    return %2, %c0_i32_0 : i32, i32
  }
  func.func @transform_1(%arg0: i32, %arg1: i32) -> (i32, i32) {
    %c1_i32 = arith.constant 1 : i32
    %0 = arith.muli %arg0, %c1_i32 : i32
    %1 = arith.addi %0, %arg1 : i32
    %c0_i32 = arith.constant 0 : i32
    %2 = arith.minsi %1, %c0_i32 : i32
    %c0_i32_0 = arith.constant 0 : i32
    %c0_i32_1 = arith.constant 0 : i32
    return %2, %c0_i32_0 : i32, i32
  }
  func.func @transform_2(%arg0: i32, %arg1: i32) -> (i32, i32) {
    %c1_i32 = arith.constant 1 : i32
    %0 = arith.muli %arg0, %c1_i32 : i32
    %1 = arith.addi %0, %arg1 : i32
    %c0_i32 = arith.constant 0 : i32
    %2 = arith.minsi %1, %c0_i32 : i32
    %c0_i32_0 = arith.constant 0 : i32
    %c0_i32_1 = arith.constant 0 : i32
    return %2, %c0_i32_0 : i32, i32
  }
  func.func @transform_3(%arg0: i32, %arg1: i32) -> (i32, i32) {
    %c1_i32 = arith.constant 1 : i32
    %0 = arith.muli %arg0, %c1_i32 : i32
    %1 = arith.addi %0, %arg1 : i32
    %c0_i32 = arith.constant 0 : i32
    %2 = arith.minsi %1, %c0_i32 : i32
    %c0_i32_0 = arith.constant 0 : i32
    %c0_i32_1 = arith.constant 0 : i32
    return %2, %c0_i32_0 : i32, i32
  }
  func.func @transform_4(%arg0: i32, %arg1: i32) -> (i32, i32) {
    %c1_i32 = arith.constant 1 : i32
    %0 = arith.muli %arg0, %c1_i32 : i32
    %1 = arith.addi %0, %arg1 : i32
    %c0_i32 = arith.constant 0 : i32
    %2 = arith.minsi %1, %c0_i32 : i32
    %c0_i32_0 = arith.constant 0 : i32
    %c0_i32_1 = arith.constant 0 : i32
    return %2, %c0_i32_0 : i32, i32
  }
  func.func @transform_5(%arg0: i32, %arg1: i32) -> (i32, i32) {
    %c1_i32 = arith.constant 1 : i32
    %0 = arith.muli %arg0, %c1_i32 : i32
    %1 = arith.addi %0, %arg1 : i32
    %c0_i32 = arith.constant 0 : i32
    %2 = arith.minsi %1, %c0_i32 : i32
    %c0_i32_0 = arith.constant 0 : i32
    %c0_i32_1 = arith.constant 0 : i32
    return %2, %c0_i32_0 : i32, i32
  }
  func.func @transform_6(%arg0: i32, %arg1: i32) -> (i32, i32) {
    %c0_i32 = arith.constant 0 : i32
    %c0_i32_0 = arith.constant 0 : i32
    %c0_i32_1 = arith.constant 0 : i32
    return %c0_i32, %c0_i32_0 : i32, i32
  }
  func.func @transform_7(%arg0: i32, %arg1: i32) -> (i32, i32) {
    %c0_i32 = arith.constant 0 : i32
    %c0_i32_0 = arith.constant 0 : i32
    %c0_i32_1 = arith.constant 0 : i32
    return %c0_i32, %c0_i32_0 : i32, i32
  }
  func.func @transform_8(%arg0: i32, %arg1: i32) -> (i32, i32, i32) {
    %c0_i32 = arith.constant 0 : i32
    %c0_i32_0 = arith.constant 0 : i32
    %c0_i32_1 = arith.constant 0 : i32
    return %arg0, %c0_i32, %c0_i32_0 : i32, i32, i32
  }
  func.func @transform_9(%arg0: i32, %arg1: i32) -> (i32, i32, i32) {
    %c0_i32 = arith.constant 0 : i32
    %c0_i32_0 = arith.constant 0 : i32
    %c0_i32_1 = arith.constant 0 : i32
    return %arg0, %c0_i32, %c0_i32_0 : i32, i32, i32
  }
}

</mosaic_0001>

<llo_original>
// kernel: tpu_custom_call.1
$region0: #{tpu_custom_call.1}
  #allocation0 [shape = 'u32[]', space=smem, size = 0x4, offset = 0x4, fixed_abs, tag = 'smem constant byte address 0x4 - core index']
  #allocation1 [shape = 'u32[72,128]{1,0:T(1,128)}', space=vmem, size = 0x9000, scoped, tag = 'internal scratch']
  #allocation2 [shape = 'f32[1,1]{1,0:T(1,128)}', space=vmem, size = 0x200, scoped, tag = 'scratch operand']
  #allocation3 [shape = 'f32[1,32]{1,0:T(1,128)}', space=vmem, size = 0x200, scoped, tag = 'scratch operand']
  #allocation4 [shape = 'f32[1,32]{1,0:T(1,128)}', space=vmem, size = 0x200, scoped, tag = 'scratch operand']
  #allocation5 [shape = 'f32[1,32]{1,0:T(1,128)}', space=vmem, size = 0x200, scoped, tag = 'scratch operand']
  #allocation6 [shape = 'f32[1,32]{1,0:T(1,128)}', space=vmem, size = 0x200, scoped, tag = 'scratch operand']
  #allocation7 [shape = 'f32[1,32]{1,0:T(1,128)}', space=vmem, size = 0x200, scoped, tag = 'scratch operand']
  #allocation8 [shape = 'f32[1,32]{1,0:T(1,128)}', space=vmem, size = 0x200, scoped, tag = 'scratch operand']
  #allocation9 [shape = 'f32[1,32]{1,0:T(1,128)}', space=vmem, size = 0x200, scoped, tag = 'scratch operand']
  %s0 = inlined_call_operand.vmem [shape: f32[8,16], index: 0, kind: input, shape index: {}]
  %s1 = inlined_call_operand.vmem [shape: s32[8,1], index: 1, kind: input, shape index: {}]
  %s2 = inlined_call_operand.hbm [shape: f32[8,32], index: 2, kind: input, shape index: {}]
  %s3 = inlined_call_operand.hbm [shape: f32[8,32], index: 3, kind: input, shape index: {}]
  %s4 = inlined_call_operand.hbm [shape: f32[8,32], index: 4, kind: input, shape index: {}]
  %s5 = inlined_call_operand.hbm [shape: f32[8,32], index: 5, kind: input, shape index: {}]
  %s6 = inlined_call_operand.hbm [shape: f32[32,64], index: 6, kind: input, shape index: {}]
  %s7 = inlined_call_operand.vmem [shape: f32[1,64], index: 7, kind: input, shape index: {}]
  %s8 = inlined_call_operand.hbm [shape: f32[1,1,8], index: 8, kind: output, shape index: {0}]
  %s9 = inlined_call_operand.vmem [shape: f32[1,5,32], index: 9, kind: output, shape index: {1}]
  %10 = xla_tuple %s8, %s9
  %s11 = sld [smem:[#allocation0]]
  $region78: #{tpu_custom_call.1} parent=0
    _
  %s13 = ssub.s32 1, %s11
  %s14 = scalar_select 0, %s13, %s11
  $region1: #{tpu_custom_call.1} parent=0
    #allocation10 [shape = 'u8[4096]{0}', space=vmem, size = 0x1000, scoped, tag = 'input window, operand 2, single buffered']
    #allocation11 [shape = 's32[1]{0}', space=sflag, size = 0x4, scoped, tag = 'scoped memory for tpu_custom_call.1']
    #allocation12 [shape = 's32[1]{0}', space=sflag, size = 0x4, scoped, tag = 'scoped memory for tpu_custom_call.1']
    #allocation13 [shape = 'u8[4096]{0}', space=vmem, size = 0x1000, scoped, tag = 'input window, operand 3, single buffered']
    #allocation14 [shape = 's32[1]{0}', space=sflag, size = 0x4, scoped, tag = 'scoped memory for tpu_custom_call.1']
    #allocation15 [shape = 'u8[4096]{0}', space=vmem, size = 0x1000, scoped, tag = 'input window, operand 4, single buffered']
    #allocation16 [shape = 'u8[4096]{0}', space=vmem, size = 0x1000, scoped, tag = 'input window, operand 5, single buffered']
    #allocation17 [shape = 's32[1]{0}', space=sflag, size = 0x4, scoped, tag = 'scoped memory for tpu_custom_call.1']
    #allocation18 [shape = 'u8[16384]{0}', space=vmem, size = 0x4000, scoped, tag = 'input window, operand 6, single buffered']
    #allocation19 [shape = 'u8[512]{0}', space=vmem, size = 0x400, scoped, tag = 'output window, operand 0, single buffered']
    %15 = vsyncpa [#allocation11], 0
    %16 = vsyncpa [#allocation14], 0
    %17 = vsyncpa [#allocation17], 0
    %18 = vsyncpa [#allocation12], 0
    // Predicated region
    $region2: #{tpu_custom_call.1} parent=1 // pred_check
      _
    $region3: #{tpu_custom_call.1} parent=1 // pred_check_branch
      %20 = sbr.rel (0) target = $region5
    $region4: #{tpu_custom_call.1} parent=1 // pred_region
      %s21 = sadd.s32 0, 0
      %p22 = scmp.lt.s32.totalorder %s21, 0
      %s23 = scalar_select %p22, %s21, 0
      %p24 = scmp.lt.s32.totalorder %s23, 0
      %s25 = scalar_select %p24, %s23, 0
      %s26 = smul.addr %s25, 8
      %s27 = scalar_lea.vmem %s0, %s26
      %s28 = sadd.s32 0, 0
      %p29 = scmp.lt.s32.totalorder %s28, 0
      %s30 = scalar_select %p29, %s28, 0
    $region5: #{tpu_custom_call.1} parent=1 // pred_fallthru
      _
    // Predicated region
    $region6: #{tpu_custom_call.1} parent=1 // pred_check
      _
    $region7: #{tpu_custom_call.1} parent=1 // pred_check_branch
      %32 = sbr.rel (0) target = $region9
    $region8: #{tpu_custom_call.1} parent=1 // pred_region
      %s33 = sadd.s32 0, 0
      %p34 = scmp.lt.s32.totalorder %s33, 0
      %s35 = scalar_select %p34, %s33, 0
      %p36 = scmp.lt.s32.totalorder %s35, 0
      %s37 = scalar_select %p36, %s35, 0
      %s38 = smul.addr %s37, 8
      %s39 = scalar_lea.vmem %s1, %s38
      %s40 = sadd.s32 0, 0
      %p41 = scmp.lt.s32.totalorder %s40, 0
      %s42 = scalar_select %p41, %s40, 0
    $region9: #{tpu_custom_call.1} parent=1 // pred_fallthru
      _
    // Predicated region
    $region10: #{tpu_custom_call.1} parent=1 // pred_check
      _
    $region11: #{tpu_custom_call.1} parent=1 // pred_check_branch
      %44 = sbr.rel (0) target = $region13
    $region12: #{tpu_custom_call.1} parent=1 // pred_region
      %s45 = sadd.s32 0, 0
      %p46 = scmp.lt.s32.totalorder %s45, 0
      %s47 = scalar_select %p46, %s45, 0
      %49 = vsyncadd [#allocation11], 0
      %s50 = smul.addr %s47, 8
      %s51 = scalar_lea.hbm %s2, %s50
      %s53 = sshll.u32 %s51, 4
      %s54 = int_to_ptr.hbm [resolvable:$true] %s53
      %s55 = sshll.u32 [#allocation10], 4
      %s56 = int_to_ptr.vmem [resolvable:$true] %s55
      %58 = dma.hbm_to_vmem [thread:$0]  %s54, 128, %s56, [#allocation11]
    $region13: #{tpu_custom_call.1} parent=1 // pred_fallthru
      _
    // Predicated region
    $region14: #{tpu_custom_call.1} parent=1 // pred_check
      _
    $region15: #{tpu_custom_call.1} parent=1 // pred_check_branch
      %60 = sbr.rel (0) target = $region17
    $region16: #{tpu_custom_call.1} parent=1 // pred_region
      %s61 = sadd.s32 0, 0
      %p62 = scmp.lt.s32.totalorder %s61, 0
      %s63 = scalar_select %p62, %s61, 0
      %65 = vsyncadd [#allocation14], 0
      %s66 = smul.addr %s63, 8
      %s67 = scalar_lea.hbm %s3, %s66
      %s69 = sshll.u32 %s67, 4
      %s70 = int_to_ptr.hbm [resolvable:$true] %s69
      %s71 = sshll.u32 [#allocation13], 4
      %s72 = int_to_ptr.vmem [resolvable:$true] %s71
      %74 = dma.hbm_to_vmem [thread:$0]  %s70, 128, %s72, [#allocation14]
    $region17: #{tpu_custom_call.1} parent=1 // pred_fallthru
      _
    // Predicated region
    $region18: #{tpu_custom_call.1} parent=1 // pred_check
      _
    $region19: #{tpu_custom_call.1} parent=1 // pred_check_branch
      %76 = sbr.rel (0) target = $region21
    $region20: #{tpu_custom_call.1} parent=1 // pred_region
      %s77 = sadd.s32 0, 0
      %p78 = scmp.lt.s32.totalorder %s77, 0
      %s79 = scalar_select %p78, %s77, 0
      %81 = vsyncadd [#allocation14], 0
      %s82 = smul.addr %s79, 8
      %s83 = scalar_lea.hbm %s4, %s82
      %s85 = sshll.u32 %s83, 4
      %s86 = int_to_ptr.hbm [resolvable:$true] %s85
      %s87 = sshll.u32 [#allocation15], 4
      %s88 = int_to_ptr.vmem [resolvable:$true] %s87
      %90 = dma.hbm_to_vmem [thread:$0]  %s86, 128, %s88, [#allocation14]
    $region21: #{tpu_custom_call.1} parent=1 // pred_fallthru
      _
    // Predicated region
    $region22: #{tpu_custom_call.1} parent=1 // pred_check
      _
    $region23: #{tpu_custom_call.1} parent=1 // pred_check_branch
      %92 = sbr.rel (0) target = $region25
    $region24: #{tpu_custom_call.1} parent=1 // pred_region
      %s93 = sadd.s32 0, 0
      %p94 = scmp.lt.s32.totalorder %s93, 0
      %s95 = scalar_select %p94, %s93, 0
      %97 = vsyncadd [#allocation17], 0
      %s98 = smul.addr %s95, 8
      %s99 = scalar_lea.hbm %s5, %s98
      %s101 = sshll.u32 %s99, 4
      %s102 = int_to_ptr.hbm [resolvable:$true] %s101
      %s103 = sshll.u32 [#allocation16], 4
      %s104 = int_to_ptr.vmem [resolvable:$true] %s103
      %106 = dma.hbm_to_vmem [thread:$0]  %s102, 128, %s104, [#allocation17]
    $region25: #{tpu_custom_call.1} parent=1 // pred_fallthru
      _
    // Predicated region
    $region26: #{tpu_custom_call.1} parent=1 // pred_check
      _
    $region27: #{tpu_custom_call.1} parent=1 // pred_check_branch
      %108 = sbr.rel (0) target = $region29
    $region28: #{tpu_custom_call.1} parent=1 // pred_region
      %110 = vsyncadd [#allocation17], 0
      %s111 = sshll.u32 %s6, 4
      %s112 = int_to_ptr.hbm [resolvable:$true] %s111
      %s113 = sshll.u32 [#allocation18], 4
      %s114 = int_to_ptr.vmem [resolvable:$true] %s113
      %119 = dma.hbm_to_vmem [thread:$0]  %s112, 512, %s114, [#allocation17], 128, 128, 8
    $region29: #{tpu_custom_call.1} parent=1 // pred_fallthru
      _
    // Predicated region
    $region30: #{tpu_custom_call.1} parent=1 // pred_check
      _
    $region31: #{tpu_custom_call.1} parent=1 // pred_check_branch
      %121 = sbr.rel (0) target = $region33
    $region32: #{tpu_custom_call.1} parent=1 // pred_region
      _
    $region33: #{tpu_custom_call.1} parent=1 // pred_fallthru
      _
    // Predicated region
    $region34: #{tpu_custom_call.1} parent=1 // pred_check
      _
    $region35: #{tpu_custom_call.1} parent=1 // pred_check_branch
      %123 = sbr.rel (0) target = $region37
    $region36: #{tpu_custom_call.1} parent=1 // pred_region
      %125 = dma.done [#allocation11], 128
    $region37: #{tpu_custom_call.1} parent=1 // pred_fallthru
      _
    // Predicated region
    $region38: #{tpu_custom_call.1} parent=1 // pred_check
      _
    $region39: #{tpu_custom_call.1} parent=1 // pred_check_branch
      %127 = sbr.rel (0) target = $region41
    $region40: #{tpu_custom_call.1} parent=1 // pred_region
      %129 = dma.done [#allocation14], 128
    $region41: #{tpu_custom_call.1} parent=1 // pred_fallthru
      _
    // Predicated region
    $region42: #{tpu_custom_call.1} parent=1 // pred_check
      _
    $region43: #{tpu_custom_call.1} parent=1 // pred_check_branch
      %131 = sbr.rel (0) target = $region45
    $region44: #{tpu_custom_call.1} parent=1 // pred_region
      %133 = dma.done [#allocation14], 128
    $region45: #{tpu_custom_call.1} parent=1 // pred_fallthru
      _
    // Predicated region
    $region46: #{tpu_custom_call.1} parent=1 // pred_check
      _
    $region47: #{tpu_custom_call.1} parent=1 // pred_check_branch
      %135 = sbr.rel (0) target = $region49
    $region48: #{tpu_custom_call.1} parent=1 // pred_region
      %137 = dma.done [#allocation17], 128
    $region49: #{tpu_custom_call.1} parent=1 // pred_fallthru
      _
    // Predicated region
    $region50: #{tpu_custom_call.1} parent=1 // pred_check
      _
    $region51: #{tpu_custom_call.1} parent=1 // pred_check_branch
      %139 = sbr.rel (0) target = $region53
    $region52: #{tpu_custom_call.1} parent=1 // pred_region
      %141 = dma.done [#allocation17], 512
    $region53: #{tpu_custom_call.1} parent=1 // pred_fallthru
      _
    %s142 = sadd.s32 0, 0
    %p143 = scmp.lt.s32.totalorder %s142, 0
    %s144 = scalar_select %p143, %s142, 0
    %p145 = scmp.lt.s32.totalorder %s144, 0
    %s146 = scalar_select %p145, %s144, 0
    %s147 = smul.addr %s146, 8
    %s148 = scalar_lea.vmem %s0, %s147
    %s149 = sadd.s32 0, 0
    %p150 = scmp.lt.s32.totalorder %s149, 0
    %s151 = scalar_select %p150, %s149, 0
    %p152 = scmp.lt.s32.totalorder %s151, 0
    %s153 = scalar_select %p152, %s151, 0
    %s154 = smul.addr %s153, 8
    %s155 = scalar_lea.vmem %s1, %s154
    %s156 = sadd.s32 0, 0
    %p157 = scmp.lt.s32.totalorder %s156, 0
    %s158 = scalar_select %p157, %s156, 0
    %p159 = scmp.lt.s32.totalorder %s158, 0
    %s160 = scalar_select %p159, %s158, 0
    %s161 = smul.addr %s160, 8
    %s162 = scalar_lea.vmem %s0, %s161
    %s163 = sadd.s32 0, 0
    %p164 = scmp.lt.s32.totalorder %s163, 0
    %s165 = scalar_select %p164, %s163, 0
    %s166 = sadd.s32 0, 0
    %p167 = scmp.lt.s32.totalorder %s166, 0
    %s168 = scalar_select %p167, %s166, 0
    %p169 = scmp.lt.s32.totalorder %s168, 0
    %s170 = scalar_select %p169, %s168, 0
    %s171 = smul.addr %s170, 8
    %s172 = scalar_lea.vmem %s1, %s171
    %s173 = sadd.s32 0, 0
    %p174 = scmp.lt.s32.totalorder %s173, 0
    %s175 = scalar_select %p174, %s173, 0
    %s176 = sadd.s32 0, 0
    %p177 = scmp.lt.s32.totalorder %s176, 0
    %s178 = scalar_select %p177, %s176, 0
    %s179 = sadd.s32 0, 0
    %p180 = scmp.lt.s32.totalorder %s179, 0
    %s181 = scalar_select %p180, %s179, 0
    %s182 = sadd.s32 0, 0
    %p183 = scmp.lt.s32.totalorder %s182, 0
    %s184 = scalar_select %p183, %s182, 0
    %s185 = sadd.s32 0, 0
    %p186 = scmp.lt.s32.totalorder %s185, 0
    %s187 = scalar_select %p186, %s185, 0
    %p188 = scmp.eq.s32.totalorder 0, 0
    // Predicated region
    $region54: #{tpu_custom_call.1} parent=1 // pred_check
      %p189 = pneg %p188
    $region55: #{tpu_custom_call.1} parent=1 // pred_check_branch
      %191 = sbr.rel (%p189) target = $region57
    $region56: #{tpu_custom_call.1} parent=1 // pred_region
      %vm192 = vcmask 0
      %193 = vst.msk [vmem:[#allocation2] sm:$0x1] %vm192, 0.0
      %vm194 = vcmask 253952
      %195 = vst.msk [vmem:[#allocation3] sm:$0x1] %vm194, 0.0
      %196 = vst.msk [vmem:[#allocation4] sm:$0x1] %vm194, 0.0
      %197 = vst.msk [vmem:[#allocation5] sm:$0x1] %vm194, 0.0
      %198 = vst.msk [vmem:[#allocation6] sm:$0x1] %vm194, 0.0
      %199 = vst.msk [vmem:[#allocation7] sm:$0x1] %vm194, 0.0
      %200 = vst.msk [vmem:[#allocation8] sm:$0x1] %vm194, 0.0
      %201 = vst.msk [vmem:[#allocation9] sm:$0x1] %vm194, 0.0
    $region57: #{tpu_custom_call.1} parent=1 // pred_fallthru
      _
    %s202 = sadd.s32 0, 0
    %s203 = smul.u32 %s202, 8
    %v204 = vlaneseq
    %v205 = vshrl.u32 %v204, 7
    %v206 = vstv %s203
    %v207 = vadd.s32 %v206, %v205
    %vm208 = vcmp.lt.s32.totalorder %v207, 8
    %v209 = vld [vmem:[%s162] sm:$0xff]
    %v210 = vsel %vm208, 1, 0
    %vm211 = vcmp.eq.s32.totalorder %v210, 1
    %v212 = vsel %vm211, %v209, 0.0
    %v213 = vlaneseq
    %v214 = vand.u32 %v213, 127
    %vm215 = vcmask 130048
    %v216 = vsel %vm215, %v212, -inf
    %217 = vmax.xlane.f32.xlu0 %v216
    %v218 = vpop.xlane.xlu0 %217
    %v219 = vsub.f32 %v212, %v218
    %v220 = vmul.f32 %v219, 1.442695
    %v221 = vpow.pop %v220
    %v222 = vsel %vm215, %v221, 0.0
    %223 = vadd.xlane.f32.xlu0 %v222
    %v224 = vpop.xlane.xlu0 %223
    %v225 = vlog2.pop %v224
    %v226 = vmul.f32 %v225, 0.6931472
    %v227 = vld [vmem:[%s172] sm:$0xff]
    %228 = vset.pattern.permute.xlu0 0
    %229 = vperm.xlu0 %228, %v227
    %v230 = vpop.permute.xlu0 %229
    %vm231 = vcmp.eq.s32.totalorder %v214, %v230
    %v232 = vsel %vm231, %v219, 0.0
    %v233 = vsel %vm215, %v232, 0.0
    %234 = vadd.xlane.f32.xlu0 %v233
    %v235 = vpop.xlane.xlu0 %234
    %v236 = vsub.f32 %v226, %v235
    %v237 = vsel %vm208, %v236, 0.0
    %v238 = vld [vmem:[#allocation2] sm:$0x1]
    %v239 = vrot.slane %v237, 4
    %v240 = vadd.f32 %v237, %v239
    %v241 = vrot.slane %v240, 2
    %v242 = vadd.f32 %v240, %v241
    %v243 = vrot.slane %v242, 1
    %v244 = vadd.f32 %v242, %v243
    %v245 = vadd.f32 %v238, %v244
    %vm246 = vcmask 0
    %247 = vst.msk [vmem:[#allocation2] sm:$0x1] %vm246, %v245
    %v248 = vld [vmem:[#allocation10] sm:$0xff]
    %v249 = vsel %vm211, %v248, 0.0
    %v250 = vld [vmem:[#allocation13] sm:$0xff]
    %v251 = vsel %vm211, %v250, 0.0
    %v252 = vld [vmem:[#allocation3] sm:$0x1]
    %v253 = vadd.f32 %v251, 1.0
    %v254 = vmul.f32 %v249, %v249
    %v255 = vsub.f32 %v253, %v254
    %v256 = vmul.f32 %v251, 1.442695
    %v257 = vpow.pop %v256
    %v258 = vsub.f32 %v255, %v257
    %vm259 = vcmask 261120
    %v260 = vsel %vm259, %v258, 0.0
    %v261 = vrot.slane %v260, 4
    %v262 = vadd.f32 %v260, %v261
    %v263 = vrot.slane %v262, 2
    %v264 = vadd.f32 %v262, %v263
    %v265 = vrot.slane %v264, 1
    %v266 = vadd.f32 %v264, %v265
    %v267 = vadd.f32 %v252, %v266
    %vm268 = vcmask 253952
    %269 = vst.msk [vmem:[#allocation3] sm:$0x1] %vm268, %v267
    %v270 = vld [vmem:[#allocation15] sm:$0xff]
    %v271 = vsel %vm211, %v270, 0.0
    %v272 = vld [vmem:[#allocation16] sm:$0xff]
    %v273 = vsel %vm211, %v272, 0.0
    %v274 = vld [vmem:[#allocation18] sm:$0xff]
    %v275 = vld [vmem:[#allocation18 + $0x8] sm:$0xff]
    %v276 = vld [vmem:[#allocation18 + $0x10] sm:$0xff]
    %v277 = vld [vmem:[#allocation18 + $0x18] sm:$0xff]
    %v278 = vld [vmem:[%s7] sm:$0x1]
    %v280 = vperm.slane %v278, 0
    %v283 = vsel %vm259, %v271, 0
    %285 = vmatpush.msra.mxu0 0.0
    %286 = vmatpush.msra.mxu0 0.0
    %287 = vmatpush.msra.mxu0 0.0
    %288 = vmatpush.msra.mxu0 0.0
    %289 = vmatpush.msra.mxu0 0.0
    %290 = vmatpush.msra.mxu0 0.0
    %291 = vmatpush.msra.mxu0 0.0
    %292 = vmatpush.msra.mxu0 0.0
    %293 = vmatpush.msra.mxu0 0.0
    %294 = vmatpush.msra.mxu0 0.0
    %295 = vmatpush.msra.mxu0 0.0
    %296 = vmatpush.msra.mxu0 0.0
    %297 = vmatpush.msra.mxu0 %v277
    %298 = vmatpush.msra.mxu0 %v276
    %299 = vmatpush.msra.mxu0 %v275
    %300 = vmatpush.msra.mxu0 %v274
    %301 = vmatmul.f32.gmra.mxu0 %v283
    %v302 = vpop.f32.mrf.mxu0
    %v303 = vadd.f32 %v280, %v302
    %304 = vdwg.mxu0
    %v305 = vtanh.pop %v303
    %v306 = vsub.f32 0.0, %v305
    %v307 = vmul.f32 %v306, 1.442695
    %v308 = vpow.pop %v307
    %v309 = vsel %vm211, %v308, 0.0
    %v310 = vsub.f32 %v303, %v273
    %v311 = vld [vmem:[#allocation4] sm:$0x1]
    %313 = vrot.lane.b32.xlu0 %v310, 32
    %v314 = vpop.permute.xlu0 %313
    %v316 = vmul.f32 %v309, %v314
    %v317 = vmul.f32 %v316, %v314
    %vm318 = vcmask 523520
    %v319 = vsel %vm318, %v317, 0.0
    %v320 = vrot.slane %v319, 4
    %v321 = vadd.f32 %v319, %v320
    %v322 = vrot.slane %v321, 2
    %v323 = vadd.f32 %v321, %v322
    %v324 = vrot.slane %v323, 1
    %v325 = vadd.f32 %v323, %v324
    %327 = vrot.lane.b32.xlu0 %v325, 96
    %v328 = vpop.permute.xlu0 %327
    %v330 = vadd.f32 %v311, %v328
    %331 = vst.msk [vmem:[#allocation4] sm:$0x1] %vm268, %v330
    %333 = vrot.lane.b32.xlu0 %v303, 32
    %v334 = vpop.permute.xlu0 %333
    %v336 = vmul.f32 %v309, %v334
    %v337 = vld [vmem:[#allocation5] sm:$0x1]
    %v338 = vsel %vm259, %v273, 0.0
    %v339 = vrot.slane %v338, 4
    %v340 = vadd.f32 %v338, %v339
    %v341 = vrot.slane %v340, 2
    %v342 = vadd.f32 %v340, %v341
    %v343 = vrot.slane %v342, 1
    %v344 = vadd.f32 %v342, %v343
    %v345 = vadd.f32 %v337, %v344
    %346 = vst.msk [vmem:[#allocation5] sm:$0x1] %vm268, %v345
    %v347 = vld [vmem:[#allocation6] sm:$0x1]
    %v348 = vmul.f32 %v273, %v273
    %v349 = vsel %vm259, %v348, 0.0
    %v350 = vrot.slane %v349, 4
    %v351 = vadd.f32 %v349, %v350
    %v352 = vrot.slane %v351, 2
    %v353 = vadd.f32 %v351, %v352
    %v354 = vrot.slane %v353, 1
    %v355 = vadd.f32 %v353, %v354
    %v356 = vadd.f32 %v347, %v355
    %357 = vst.msk [vmem:[#allocation6] sm:$0x1] %vm268, %v356
    %v358 = vld [vmem:[#allocation7] sm:$0x1]
    %v359 = vsel %vm318, %v309, 0.0
    %v360 = vrot.slane %v359, 4
    %v361 = vadd.f32 %v359, %v360
    %v362 = vrot.slane %v361, 2
    %v363 = vadd.f32 %v361, %v362
    %v364 = vrot.slane %v363, 1
    %v365 = vadd.f32 %v363, %v364
    %367 = vrot.lane.b32.xlu0 %v365, 96
    %v368 = vpop.permute.xlu0 %367
    %v370 = vadd.f32 %v358, %v368
    %371 = vst.msk [vmem:[#allocation7] sm:$0x1] %vm268, %v370
    %v372 = vld [vmem:[#allocation8] sm:$0x1]
    %v373 = vsel %vm318, %v336, 0.0
    %v374 = vrot.slane %v373, 4
    %v375 = vadd.f32 %v373, %v374
    %v376 = vrot.slane %v375, 2
    %v377 = vadd.f32 %v375, %v376
    %v378 = vrot.slane %v377, 1
    %v379 = vadd.f32 %v377, %v378
    %381 = vrot.lane.b32.xlu0 %v379, 96
    %v382 = vpop.permute.xlu0 %381
    %v384 = vadd.f32 %v372, %v382
    %385 = vst.msk [vmem:[#allocation8] sm:$0x1] %vm268, %v384
    %v386 = vld [vmem:[#allocation9] sm:$0x1]
    %v387 = vmul.f32 %v336, %v334
    %v388 = vsel %vm318, %v387, 0.0
    %v389 = vrot.slane %v388, 4
    %v390 = vadd.f32 %v388, %v389
    %v391 = vrot.slane %v390, 2
    %v392 = vadd.f32 %v390, %v391
    %v393 = vrot.slane %v392, 1
    %v394 = vadd.f32 %v392, %v393
    %396 = vrot.lane.b32.xlu0 %v394, 96
    %v397 = vpop.permute.xlu0 %396
    %v399 = vadd.f32 %v386, %v397
    %400 = vst.msk [vmem:[#allocation9] sm:$0x1] %vm268, %v399
    // Predicated region
    $region58: #{tpu_custom_call.1} parent=1 // pred_check
      %p401 = pneg %p188
    $region59: #{tpu_custom_call.1} parent=1 // pred_check_branch
      %403 = sbr.rel (%p401) target = $region61
    $region60: #{tpu_custom_call.1} parent=1 // pred_region
      %v404 = vld [vmem:[#allocation2] sm:$0x1]
      %v405 = vadd.f32 %v404, 0.0
      %s406 = vtos %v405
      %v407 = vld [vmem:[#allocation3] sm:$0x1]
      %v408 = vsel %vm268, %v407, 0.0
      %409 = vadd.xlane.f32.xlu0 %v408
      %v410 = vpop.xlane.xlu0 %409
      %v411 = vrot.slane %v410, 4
      %v412 = vadd.f32 %v410, %v411
      %v413 = vrot.slane %v412, 2
      %v414 = vadd.f32 %v412, %v413
      %v415 = vrot.slane %v414, 1
      %v416 = vadd.f32 %v414, %v415
      %s417 = vtos %v416
      %v418 = vld [vmem:[#allocation4] sm:$0x1]
      %v419 = vsel %vm268, %v418, 0.0
      %420 = vadd.xlane.f32.xlu0 %v419
      %v421 = vpop.xlane.xlu0 %420
      %v422 = vrot.slane %v421, 4
      %v423 = vadd.f32 %v421, %v422
      %v424 = vrot.slane %v423, 2
      %v425 = vadd.f32 %v423, %v424
      %v426 = vrot.slane %v425, 1
      %v427 = vadd.f32 %v425, %v426
      %s428 = vtos %v427
      %vm429 = vcmp.eq.s32.totalorder %v214, 0
      %v430 = vstv %s406
      %v431 = vsel %vm429, %v430, 0.0
      %vm432 = vcmp.eq.s32.totalorder %v214, 1
      %v433 = vstv %s417
      %v434 = vsel %vm432, %v433, 0.0
      %v435 = vadd.f32 %v431, %v434
      %vm436 = vcmp.eq.s32.totalorder %v214, 2
      %v437 = vstv %s428
      %v438 = vsel %vm436, %v437, 0.0
      %v439 = vadd.f32 %v435, %v438
      %vm440 = vcmask 57344
      %441 = vst.msk [vmem:[#allocation19] sm:$0x1] %vm440, %v439
      %v442 = vld [vmem:[#allocation5] sm:$0x1]
      %v443 = vld [vmem:[#allocation6] sm:$0x1]
      %v444 = vld [vmem:[#allocation7] sm:$0x1]
      %v445 = vld [vmem:[#allocation8] sm:$0x1]
      %v446 = vld [vmem:[#allocation9] sm:$0x1]
      %v448 = vperm.slane %v443, 0
      %v451 = vperm.slane %v444, 0
      %v454 = vperm.slane %v445, 0
      %v457 = vperm.slane %v446, 0
      %vm459 = vcmask 1040384
      %v460 = vsel %vm459, %v442, %v448
      %vm461 = vcmask 1041408
      %v462 = vsel %vm461, %v460, %v451
      %vm463 = vcmask 1042432
      %v464 = vsel %vm463, %v462, %v454
      %vm465 = vcmask 1043456
      %v466 = vsel %vm465, %v464, %v457
      %vm467 = vcmask 258048
      %468 = vst.msk [vmem:[%s9] sm:$0x1f] %vm467, %v466
    $region61: #{tpu_custom_call.1} parent=1 // pred_fallthru
      _
    // Predicated region
    $region62: #{tpu_custom_call.1} parent=1 // pred_check
      _
    $region63: #{tpu_custom_call.1} parent=1 // pred_check_branch
      %470 = sbr.rel (0) target = $region65
    $region64: #{tpu_custom_call.1} parent=1 // pred_region
      %472 = vsyncadd [#allocation12], 0
      %s474 = sshll.u32 [#allocation19], 4
      %s475 = int_to_ptr.vmem [resolvable:$true] %s474
      %s476 = sshll.u32 %s8, 4
      %s477 = int_to_ptr.hbm [resolvable:$true] %s476
      %479 = dma.vmem_to_hbm [thread:$0]  %s475, 16, %s477, [#allocation12]
    $region65: #{tpu_custom_call.1} parent=1 // pred_fallthru
      _
    // Predicated region
    $region66: #{tpu_custom_call.1} parent=1 // pred_check
      _
    $region67: #{tpu_custom_call.1} parent=1 // pred_check_branch
      %481 = sbr.rel (0) target = $region69
    $region68: #{tpu_custom_call.1} parent=1 // pred_region
      _
    $region69: #{tpu_custom_call.1} parent=1 // pred_fallthru
      _
    // Predicated region
    $region70: #{tpu_custom_call.1} parent=1 // pred_check
      _
    $region71: #{tpu_custom_call.1} parent=1 // pred_check_branch
      %483 = sbr.rel (0) target = $region73
    $region72: #{tpu_custom_call.1} parent=1 // pred_region
      %485 = dma.done [#allocation12], 16
    $region73: #{tpu_custom_call.1} parent=1 // pred_fallthru
      _
    // Predicated region
    $region74: #{tpu_custom_call.1} parent=1 // pred_check
      _
    $region75: #{tpu_custom_call.1} parent=1 // pred_check_branch
      %487 = sbr.rel (0) target = $region77
    $region76: #{tpu_custom_call.1} parent=1 // pred_region
      _
    $region77: #{tpu_custom_call.1} parent=1 // pred_fallthru
      _
    %488 = vsyncpa [#allocation11], 1
    %489 = vsyncpa [#allocation14], 1
    %490 = vsyncpa [#allocation17], 1
    %491 = vsyncpa [#allocation12], 1

</llo_original>
